<compile_context>
chip_gen: v5e
topology: v5e:2x2
jax: 0.10.0
libtpu: 0.0.40
codegen_flags: <defaults>
</compile_context>

<pallas_src>
import jax
import jax.numpy as jnp
from jax.experimental import pallas as pl
from jax.experimental.pallas import tpu as pltpu

# Logical (PyTorch) layer dims; internal dims lane-padded, external edges kept.
DIMS = [70, 28, 250, 10, 250, 500, 70]
PAD_DIMS = [70, 128, 256, 128, 256, 512, 70]


def _round_up(n, m):
    return ((n + m - 1) // m) * m


def autoencoder_kernel(x_ref,
                       w1_ref, b1_ref,
                       w2_ref, b2_ref,
                       w3_ref, b3_ref,
                       w4_ref, b4_ref,
                       w5_ref, b5_ref,
                       w6_ref, b6_ref,
                       o_ref):
    compute_dtype = w1_ref.dtype          # bf16 matmul inputs
    # Cast inside the kernel (no wrapper-side cast pass); K=70 dot is masked
    # by Mosaic, padded weight rows/cols contribute exact zeros.
    h = x_ref[...].astype(compute_dtype)  # (tile, 70)

    def linear(h, w_ref, b_ref):
        # MXU matmul, f32 accumulation; f32 bias add on the VPU.
        return jnp.dot(h, w_ref[...], preferred_element_type=jnp.float32) + b_ref[...]

    def relu_c(y_f32):
        # f32 elementwise then single cast to bf16 (v5e has no bf16 VPU).
        return jnp.maximum(y_f32, 0.0).astype(compute_dtype)

    # encoder
    h = relu_c(linear(h, w1_ref, b1_ref))                 # relu(e1)
    h = relu_c(linear(h, w2_ref, b2_ref))                 # relu(e2)
    z = linear(h, w3_ref, b3_ref)                         # lv (f32)
    # sigmoid(z) = 1/(1+exp(-z)): exp on EUP + approx vrcp (separate slots).
    h = pl.reciprocal(1.0 + jnp.exp(-z), approx=True).astype(compute_dtype)
    # decoder
    h = relu_c(linear(h, w4_ref, b4_ref))                 # relu(d1)
    h = relu_c(linear(h, w5_ref, b5_ref))                 # relu(d2)
    out = linear(h, w6_ref, b6_ref)                       # output_layer, (tile, 70) f32

    o_ref[...] = out.astype(o_ref.dtype)                  # written directly in x.dtype


def prepare_params(params, compute_dtype=jnp.bfloat16):
    """One-time: zero-pad each (in,out) weight / (1,out) bias to PAD_DIMS, cast to bf16."""
    padded = []
    for li in range(6):
        w, b = params[li]
        in_p, out_p = PAD_DIMS[li], PAD_DIMS[li + 1]
        wp = jnp.zeros((in_p, out_p), compute_dtype)
        wp = wp.at[: w.shape[0], : w.shape[1]].set(w.astype(compute_dtype))
        bp = jnp.zeros((1, out_p), jnp.float32)
        bp = bp.at[:, : b.shape[1]].set(b.astype(jnp.float32))
        padded.append((wp, bp))
    return padded


def _choose_batch_tile(B, batch_tile):
    """Sublane-aligned tile, capped at 2048 (VMEM), even grid-step count for v7x."""
    t_max = max(8, _round_up(min(batch_tile, 2048), 8))
    if B <= min(256, t_max):
        # Tiny batch: one step; splitting only adds fixed per-step overhead.
        return _round_up(max(B, 8), 8)
    n_pairs = max(1, pl.cdiv(B, 2 * t_max))          # -> 2*n_pairs steps (even)
    return min(t_max, _round_up(pl.cdiv(B, 2 * n_pairs), 8))


def autoencoder_forward(x, padded_params, *, batch_tile=1024):
    """Full autoencoder forward pass as a single fused Pallas kernel."""
    B, F_in = x.shape
    assert F_in == DIMS[0]

    tile = _choose_batch_tile(B, batch_tile)
    n_steps = pl.cdiv(B, tile)
    B_pad = n_steps * tile
    # Only touch x if the batch is ragged (cheap, rows-only, no feature pad/cast).
    x_in = x if B_pad == B else jnp.pad(x, ((0, B_pad - B), (0, 0)))

    in_specs = [pl.BlockSpec((tile, DIMS[0]), lambda i: (i, 0))]
    flat_params = []
    for w, b in padded_params:
        # Whole, grid-invariant blocks (never re-fetched across grid steps).
        in_specs.append(pl.BlockSpec(w.shape, lambda i: (0, 0)))
        in_specs.append(pl.BlockSpec(b.shape, lambda i: (0, 0)))
        flat_params += [w, b]

    out = pl.pallas_call(
        autoencoder_kernel,
        out_shape=jax.ShapeDtypeStruct((B_pad, DIMS[-1]), x.dtype),
        grid_spec=pltpu.PrefetchScalarGridSpec(
            num_scalar_prefetch=0,
            grid=(n_steps,),
            in_specs=in_specs,
            out_specs=pl.BlockSpec((tile, DIMS[-1]), lambda i: (i, 0)),
        ),
        compiler_params=pltpu.CompilerParams(
            dimension_semantics=("parallel",)),
    )(x_in, *flat_params)

    return out if B_pad == B else out[:B]


def init_params(key):
    """Deterministic init; weights stored as (in, out), matching x @ W + b."""
    params = []
    for li in range(6):
        fan_in, fan_out = DIMS[li], DIMS[li + 1]
        key, kw, kb = jax.random.split(key, 3)
        bound = 1.0 / jnp.sqrt(fan_in)   # same scale as PyTorch's default Linear init
        w = jax.random.uniform(kw, (fan_in, fan_out), jnp.float32, -bound, bound)
        b = jax.random.uniform(kb, (1, fan_out), jnp.float32, -bound, bound)
        params.append((w, b))
    return params


def reference_forward(x, params, compute_dtype=jnp.bfloat16):
    """Pure-JAX reference mirroring the kernel's bf16-input / f32-accumulate matmuls."""
    h = x
    acts = ["relu", "relu", "sigmoid", "relu", "relu", "none"]
    for (w, b), act in zip(params, acts):
        y = jnp.dot(h.astype(compute_dtype), w.astype(compute_dtype),
                    preferred_element_type=jnp.float32) + b
        if act == "relu":
            h = jnp.maximum(y, 0.0)
        elif act == "sigmoid":
            h = jax.nn.sigmoid(y)
        else:
            h = y
    return h


if __name__ == "__main__":
    key = jax.random.PRNGKey(0)
    key, kx1, kx2 = jax.random.split(key, 3)
    params = init_params(key)
    padded_params = prepare_params(params)   # one-time weight pad/cast

    # Small batch (single grid step, tile == B, no wrapper pad at all).
    B1 = 8
    x1 = jax.random.normal(kx1, (B1, DIMS[0]), jnp.float32)
    out1 = jax.block_until_ready(autoencoder_forward(x1, padded_params))
    ref1 = reference_forward(x1, params)
    assert out1.shape == (B1, DIMS[-1])
    assert out1.dtype == x1.dtype
    assert jnp.allclose(out1, ref1, atol=2e-2, rtol=2e-2), "mismatch vs reference (B=8)"

    # Ragged medium batch -> tile=152, 2 even grid steps (v7x: both TCs busy),
    # 4 padded rows sliced off afterwards.
    B2 = 300
    x2 = jax.random.normal(kx2, (B2, DIMS[0]), jnp.float32)
    out2 = jax.block_until_ready(autoencoder_forward(x2, padded_params))
    ref2 = reference_forward(x2, params)
    assert out2.shape == (B2, DIMS[-1])
    assert jnp.allclose(out2, ref2, atol=2e-2, rtol=2e-2), "mismatch vs reference (B=300)"

    print("KERNEL_OK")
</pallas_src>

<mosaic_0001>
module attributes {stable_mosaic.version = 11 : i64} {
  func.func @autoencoder_kernel(%arg0: i32, %arg1: memref<8x70xf32, #tpu.memory_space<vmem>>, %arg2: memref<70x128xbf16, #tpu.memory_space<vmem>>, %arg3: memref<1x128xf32, #tpu.memory_space<vmem>>, %arg4: memref<128x256xbf16, #tpu.memory_space<vmem>>, %arg5: memref<1x256xf32, #tpu.memory_space<vmem>>, %arg6: memref<256x128xbf16, #tpu.memory_space<vmem>>, %arg7: memref<1x128xf32, #tpu.memory_space<vmem>>, %arg8: memref<128x256xbf16, #tpu.memory_space<vmem>>, %arg9: memref<1x256xf32, #tpu.memory_space<vmem>>, %arg10: memref<256x512xbf16, #tpu.memory_space<vmem>>, %arg11: memref<1x512xf32, #tpu.memory_space<vmem>>, %arg12: memref<512x70xbf16, #tpu.memory_space<vmem>>, %arg13: memref<1x70xf32, #tpu.memory_space<vmem>>, %arg14: memref<8x70xf32, #tpu.memory_space<vmem>>) attributes {dimension_semantics = [#tpu.dimension_semantics<parallel>], iteration_bounds = array<i64: 1>, scalar_prefetch = 0 : i64, scratch_operands = 0 : i64, tpu.core_type = #tpu.core_type<tc>, window_params = [{transform_indices = @transform_0, window_bounds = array<i64: 8, 70>}, {pipeline_mode = #tpu.pipeline_mode<synchronous>, transform_indices = @transform_1, window_bounds = array<i64: 70, 128>}, {pipeline_mode = #tpu.pipeline_mode<synchronous>, transform_indices = @transform_2, window_bounds = array<i64: 1, 128>}, {pipeline_mode = #tpu.pipeline_mode<synchronous>, transform_indices = @transform_3, window_bounds = array<i64: 128, 256>}, {pipeline_mode = #tpu.pipeline_mode<synchronous>, transform_indices = @transform_4, window_bounds = array<i64: 1, 256>}, {pipeline_mode = #tpu.pipeline_mode<synchronous>, transform_indices = @transform_5, window_bounds = array<i64: 256, 128>}, {pipeline_mode = #tpu.pipeline_mode<synchronous>, transform_indices = @transform_6, window_bounds = array<i64: 1, 128>}, {pipeline_mode = #tpu.pipeline_mode<synchronous>, transform_indices = @transform_7, window_bounds = array<i64: 128, 256>}, {pipeline_mode = #tpu.pipeline_mode<synchronous>, transform_indices = @transform_8, window_bounds = array<i64: 1, 256>}, {pipeline_mode = #tpu.pipeline_mode<synchronous>, transform_indices = @transform_9, window_bounds = array<i64: 256, 512>}, {pipeline_mode = #tpu.pipeline_mode<synchronous>, transform_indices = @transform_10, window_bounds = array<i64: 1, 512>}, {pipeline_mode = #tpu.pipeline_mode<synchronous>, transform_indices = @transform_11, window_bounds = array<i64: 512, 70>}, {pipeline_mode = #tpu.pipeline_mode<synchronous>, transform_indices = @transform_12, window_bounds = array<i64: 1, 70>}, {transform_indices = @transform_13, window_bounds = array<i64: 8, 70>}]} {
    %c0 = arith.constant 0 : index
    %c0_0 = arith.constant 0 : index
    %0 = vector.load %arg1[%c0, %c0_0] : memref<8x70xf32, #tpu.memory_space<vmem>>, vector<8x70xf32>
    %1 = arith.truncf %0 : vector<8x70xf32> to vector<8x70xbf16>
    %c0_1 = arith.constant 0 : index
    %c0_2 = arith.constant 0 : index
    %2 = vector.load %arg2[%c0_1, %c0_2] : memref<70x128xbf16, #tpu.memory_space<vmem>>, vector<70x128xbf16>
    %cst = arith.constant dense<0.000000e+00> : vector<8x128xf32>
    %3 = tpu.matmul %1, %2, %cst {dimension_numbers = #tpu.dot_dimension_numbers<[1], [0], [0], [1], [0, 0, 1, 1], [], []>} : vector<8x70xbf16>, vector<70x128xbf16>, vector<8x128xf32> -> vector<8x128xf32>
    %c0_3 = arith.constant 0 : index
    %c0_4 = arith.constant 0 : index
    %4 = vector.load %arg3[%c0_3, %c0_4] : memref<1x128xf32, #tpu.memory_space<vmem>>, vector<1x128xf32>
    %5 = vector.broadcast %4 : vector<1x128xf32> to vector<8x128xf32>
    %6 = arith.addf %3, %5 : vector<8x128xf32>
    %cst_5 = arith.constant 0.000000e+00 : f32
    %7 = vector.broadcast %cst_5 : f32 to vector<8x128xf32>
    %8 = arith.maximumf %6, %7 : vector<8x128xf32>
    %9 = arith.truncf %8 : vector<8x128xf32> to vector<8x128xbf16>
    %c0_6 = arith.constant 0 : index
    %c0_7 = arith.constant 0 : index
    %10 = vector.load %arg4[%c0_6, %c0_7] : memref<128x256xbf16, #tpu.memory_space<vmem>>, vector<128x256xbf16>
    %cst_8 = arith.constant dense<0.000000e+00> : vector<8x256xf32>
    %11 = tpu.matmul %9, %10, %cst_8 {dimension_numbers = #tpu.dot_dimension_numbers<[1], [0], [0], [1], [0, 0, 1, 1], [], []>} : vector<8x128xbf16>, vector<128x256xbf16>, vector<8x256xf32> -> vector<8x256xf32>
    %c0_9 = arith.constant 0 : index
    %c0_10 = arith.constant 0 : index
    %12 = vector.load %arg5[%c0_9, %c0_10] : memref<1x256xf32, #tpu.memory_space<vmem>>, vector<1x256xf32>
    %13 = vector.broadcast %12 : vector<1x256xf32> to vector<8x256xf32>
    %14 = arith.addf %11, %13 : vector<8x256xf32>
    %cst_11 = arith.constant 0.000000e+00 : f32
    %15 = vector.broadcast %cst_11 : f32 to vector<8x256xf32>
    %16 = arith.maximumf %14, %15 : vector<8x256xf32>
    %17 = arith.truncf %16 : vector<8x256xf32> to vector<8x256xbf16>
    %c0_12 = arith.constant 0 : index
    %c0_13 = arith.constant 0 : index
    %18 = vector.load %arg6[%c0_12, %c0_13] : memref<256x128xbf16, #tpu.memory_space<vmem>>, vector<256x128xbf16>
    %cst_14 = arith.constant dense<0.000000e+00> : vector<8x128xf32>
    %19 = tpu.matmul %17, %18, %cst_14 {dimension_numbers = #tpu.dot_dimension_numbers<[1], [0], [0], [1], [0, 0, 1, 1], [], []>} : vector<8x256xbf16>, vector<256x128xbf16>, vector<8x128xf32> -> vector<8x128xf32>
    %c0_15 = arith.constant 0 : index
    %c0_16 = arith.constant 0 : index
    %20 = vector.load %arg7[%c0_15, %c0_16] : memref<1x128xf32, #tpu.memory_space<vmem>>, vector<1x128xf32>
    %21 = vector.broadcast %20 : vector<1x128xf32> to vector<8x128xf32>
    %22 = arith.addf %19, %21 : vector<8x128xf32>
    %cst_17 = arith.constant 0.000000e+00 : f32
    %23 = vector.broadcast %cst_17 : f32 to vector<8x128xf32>
    %24 = arith.subf %23, %22 : vector<8x128xf32>
    %25 = math.exp %24 : vector<8x128xf32>
    %cst_18 = arith.constant 1.000000e+00 : f32
    %26 = vector.broadcast %cst_18 : f32 to vector<8x128xf32>
    %27 = arith.addf %26, %25 : vector<8x128xf32>
    %28 = tpu.reciprocal %27 {approx = true} : vector<8x128xf32> -> vector<8x128xf32>
    %29 = arith.truncf %28 : vector<8x128xf32> to vector<8x128xbf16>
    %c0_19 = arith.constant 0 : index
    %c0_20 = arith.constant 0 : index
    %30 = vector.load %arg8[%c0_19, %c0_20] : memref<128x256xbf16, #tpu.memory_space<vmem>>, vector<128x256xbf16>
    %cst_21 = arith.constant dense<0.000000e+00> : vector<8x256xf32>
    %31 = tpu.matmul %29, %30, %cst_21 {dimension_numbers = #tpu.dot_dimension_numbers<[1], [0], [0], [1], [0, 0, 1, 1], [], []>} : vector<8x128xbf16>, vector<128x256xbf16>, vector<8x256xf32> -> vector<8x256xf32>
    %c0_22 = arith.constant 0 : index
    %c0_23 = arith.constant 0 : index
    %32 = vector.load %arg9[%c0_22, %c0_23] : memref<1x256xf32, #tpu.memory_space<vmem>>, vector<1x256xf32>
    %33 = vector.broadcast %32 : vector<1x256xf32> to vector<8x256xf32>
    %34 = arith.addf %31, %33 : vector<8x256xf32>
    %cst_24 = arith.constant 0.000000e+00 : f32
    %35 = vector.broadcast %cst_24 : f32 to vector<8x256xf32>
    %36 = arith.maximumf %34, %35 : vector<8x256xf32>
    %37 = arith.truncf %36 : vector<8x256xf32> to vector<8x256xbf16>
    %c0_25 = arith.constant 0 : index
    %c0_26 = arith.constant 0 : index
    %38 = vector.load %arg10[%c0_25, %c0_26] : memref<256x512xbf16, #tpu.memory_space<vmem>>, vector<256x512xbf16>
    %cst_27 = arith.constant dense<0.000000e+00> : vector<8x512xf32>
    %39 = tpu.matmul %37, %38, %cst_27 {dimension_numbers = #tpu.dot_dimension_numbers<[1], [0], [0], [1], [0, 0, 1, 1], [], []>} : vector<8x256xbf16>, vector<256x512xbf16>, vector<8x512xf32> -> vector<8x512xf32>
    %c0_28 = arith.constant 0 : index
    %c0_29 = arith.constant 0 : index
    %40 = vector.load %arg11[%c0_28, %c0_29] : memref<1x512xf32, #tpu.memory_space<vmem>>, vector<1x512xf32>
    %41 = vector.broadcast %40 : vector<1x512xf32> to vector<8x512xf32>
    %42 = arith.addf %39, %41 : vector<8x512xf32>
    %cst_30 = arith.constant 0.000000e+00 : f32
    %43 = vector.broadcast %cst_30 : f32 to vector<8x512xf32>
    %44 = arith.maximumf %42, %43 : vector<8x512xf32>
    %45 = arith.truncf %44 : vector<8x512xf32> to vector<8x512xbf16>
    %c0_31 = arith.constant 0 : index
    %c0_32 = arith.constant 0 : index
    %46 = vector.load %arg12[%c0_31, %c0_32] : memref<512x70xbf16, #tpu.memory_space<vmem>>, vector<512x70xbf16>
    %cst_33 = arith.constant dense<0.000000e+00> : vector<8x70xf32>
    %47 = tpu.matmul %45, %46, %cst_33 {dimension_numbers = #tpu.dot_dimension_numbers<[1], [0], [0], [1], [0, 0, 1, 1], [], []>} : vector<8x512xbf16>, vector<512x70xbf16>, vector<8x70xf32> -> vector<8x70xf32>
    %c0_34 = arith.constant 0 : index
    %c0_35 = arith.constant 0 : index
    %48 = vector.load %arg13[%c0_34, %c0_35] : memref<1x70xf32, #tpu.memory_space<vmem>>, vector<1x70xf32>
    %49 = vector.broadcast %48 : vector<1x70xf32> to vector<8x70xf32>
    %50 = arith.addf %47, %49 : vector<8x70xf32>
    %c0_36 = arith.constant 0 : index
    %c0_37 = arith.constant 0 : index
    %51 = vector.load %arg14[%c0_36, %c0_37] : memref<8x70xf32, #tpu.memory_space<vmem>>, vector<8x70xf32>
    tpu.vector_store %arg14[%c0_36, %c0_37], %50 {strides = array<i32>} : memref<8x70xf32, #tpu.memory_space<vmem>>, vector<8x70xf32>,
    return
  }
  func.func @transform_0(%arg0: i32) -> (i32, i32) {
    %c0_i32 = arith.constant 0 : i32
    %c0_i32_0 = arith.constant 0 : i32
    return %arg0, %c0_i32 : i32, i32
  }
  func.func @transform_1(%arg0: i32) -> (i32, i32) {
    %c0_i32 = arith.constant 0 : i32
    %c0_i32_0 = arith.constant 0 : i32
    %c0_i32_1 = arith.constant 0 : i32
    return %c0_i32, %c0_i32_0 : i32, i32
  }
  func.func @transform_2(%arg0: i32) -> (i32, i32) {
    %c0_i32 = arith.constant 0 : i32
    %c0_i32_0 = arith.constant 0 : i32
    %c0_i32_1 = arith.constant 0 : i32
    return %c0_i32, %c0_i32_0 : i32, i32
  }
  func.func @transform_3(%arg0: i32) -> (i32, i32) {
    %c0_i32 = arith.constant 0 : i32
    %c0_i32_0 = arith.constant 0 : i32
    %c0_i32_1 = arith.constant 0 : i32
    return %c0_i32, %c0_i32_0 : i32, i32
  }
  func.func @transform_4(%arg0: i32) -> (i32, i32) {
    %c0_i32 = arith.constant 0 : i32
    %c0_i32_0 = arith.constant 0 : i32
    %c0_i32_1 = arith.constant 0 : i32
    return %c0_i32, %c0_i32_0 : i32, i32
  }
  func.func @transform_5(%arg0: i32) -> (i32, i32) {
    %c0_i32 = arith.constant 0 : i32
    %c0_i32_0 = arith.constant 0 : i32
    %c0_i32_1 = arith.constant 0 : i32
    return %c0_i32, %c0_i32_0 : i32, i32
  }
  func.func @transform_6(%arg0: i32) -> (i32, i32) {
    %c0_i32 = arith.constant 0 : i32
    %c0_i32_0 = arith.constant 0 : i32
    %c0_i32_1 = arith.constant 0 : i32
    return %c0_i32, %c0_i32_0 : i32, i32
  }
  func.func @transform_7(%arg0: i32) -> (i32, i32) {
    %c0_i32 = arith.constant 0 : i32
    %c0_i32_0 = arith.constant 0 : i32
    %c0_i32_1 = arith.constant 0 : i32
    return %c0_i32, %c0_i32_0 : i32, i32
  }
  func.func @transform_8(%arg0: i32) -> (i32, i32) {
    %c0_i32 = arith.constant 0 : i32
    %c0_i32_0 = arith.constant 0 : i32
    %c0_i32_1 = arith.constant 0 : i32
    return %c0_i32, %c0_i32_0 : i32, i32
  }
  func.func @transform_9(%arg0: i32) -> (i32, i32) {
    %c0_i32 = arith.constant 0 : i32
    %c0_i32_0 = arith.constant 0 : i32
    %c0_i32_1 = arith.constant 0 : i32
    return %c0_i32, %c0_i32_0 : i32, i32
  }
  func.func @transform_10(%arg0: i32) -> (i32, i32) {
    %c0_i32 = arith.constant 0 : i32
    %c0_i32_0 = arith.constant 0 : i32
    %c0_i32_1 = arith.constant 0 : i32
    return %c0_i32, %c0_i32_0 : i32, i32
  }
  func.func @transform_11(%arg0: i32) -> (i32, i32) {
    %c0_i32 = arith.constant 0 : i32
    %c0_i32_0 = arith.constant 0 : i32
    %c0_i32_1 = arith.constant 0 : i32
    return %c0_i32, %c0_i32_0 : i32, i32
  }
  func.func @transform_12(%arg0: i32) -> (i32, i32) {
    %c0_i32 = arith.constant 0 : i32
    %c0_i32_0 = arith.constant 0 : i32
    %c0_i32_1 = arith.constant 0 : i32
    return %c0_i32, %c0_i32_0 : i32, i32
  }
  func.func @transform_13(%arg0: i32) -> (i32, i32) {
    %c0_i32 = arith.constant 0 : i32
    %c0_i32_0 = arith.constant 0 : i32
    return %arg0, %c0_i32 : i32, i32
  }
}

</mosaic_0001>

<llo_original>
// kernel: tpu_custom_call.1
$region0: #{tpu_custom_call.1}
  #allocation0 [shape = 'u32[]', space=smem, size = 0x4, offset = 0x4, fixed_abs, tag = 'smem constant byte address 0x4 - core index']
  #allocation1 [shape = 'u32[72,128]{1,0:T(1,128)}', space=vmem, size = 0x9000, scoped, tag = 'internal scratch']
  %s0 = inlined_call_operand.vmem [shape: f32[8,70], index: 0, kind: input, shape index: {}]
  %s1 = inlined_call_operand.hbm [shape: bf16[70,128], index: 1, kind: input, shape index: {}]
  %s2 = inlined_call_operand.hbm [shape: f32[1,128], index: 2, kind: input, shape index: {}]
  %s3 = inlined_call_operand.vmem [shape: bf16[128,256], index: 3, kind: input, shape index: {}]
  %s4 = inlined_call_operand.vmem [shape: f32[1,256], index: 4, kind: input, shape index: {}]
  %s5 = inlined_call_operand.vmem [shape: bf16[256,128], index: 5, kind: input, shape index: {}]
  %s6 = inlined_call_operand.vmem [shape: f32[1,128], index: 6, kind: input, shape index: {}]
  %s7 = inlined_call_operand.vmem [shape: bf16[128,256], index: 7, kind: input, shape index: {}]
  %s8 = inlined_call_operand.vmem [shape: f32[1,256], index: 8, kind: input, shape index: {}]
  %s9 = inlined_call_operand.hbm [shape: bf16[256,512], index: 9, kind: input, shape index: {}]
  %s10 = inlined_call_operand.vmem [shape: f32[1,512], index: 10, kind: input, shape index: {}]
  %s11 = inlined_call_operand.vmem [shape: bf16[512,70], index: 11, kind: input, shape index: {}]
  %s12 = inlined_call_operand.vmem [shape: f32[1,70], index: 12, kind: input, shape index: {}]
  %s13 = inlined_call_operand.hbm [shape: f32[8,70], index: 13, kind: output, shape index: {}]
  %s14 = sld [smem:[#allocation0]]
  $region74: #{tpu_custom_call.1} parent=0
    _
  %s16 = ssub.s32 1, %s14
  %s17 = scalar_select 0, %s16, %s14
  $region1: #{tpu_custom_call.1} parent=0
    #allocation2 [shape = 'u8[18432]{0}', space=vmem, size = 0x4800, scoped, tag = 'input window, operand 1, single buffered']
    #allocation3 [shape = 's32[1]{0}', space=sflag, size = 0x4, scoped, tag = 'scoped memory for tpu_custom_call.1']
    #allocation4 [shape = 's32[1]{0}', space=sflag, size = 0x4, scoped, tag = 'scoped memory for tpu_custom_call.1']
    #allocation5 [shape = 'u8[512]{0}', space=vmem, size = 0x400, scoped, tag = 'input window, operand 2, single buffered']
    #allocation6 [shape = 's32[1]{0}', space=sflag, size = 0x4, scoped, tag = 'scoped memory for tpu_custom_call.1']
    #allocation7 [shape = 'u8[262144]{0}', space=vmem, size = 0x40000, scoped, tag = 'input window, operand 9, single buffered']
    #allocation8 [shape = 'u8[4096]{0}', space=vmem, size = 0x1000, scoped, tag = 'output window, operand 0, single buffered']
    %18 = vsyncpa [#allocation3], 0
    %19 = vsyncpa [#allocation6], 0
    %20 = vsyncpa [#allocation4], 0
    // Predicated region
    $region2: #{tpu_custom_call.1} parent=1 // pred_check
      _
    $region3: #{tpu_custom_call.1} parent=1 // pred_check_branch
      %22 = sbr.rel (0) target = $region5
    $region4: #{tpu_custom_call.1} parent=1 // pred_region
      _
    $region5: #{tpu_custom_call.1} parent=1 // pred_fallthru
      _
    // Predicated region
    $region6: #{tpu_custom_call.1} parent=1 // pred_check
      _
    $region7: #{tpu_custom_call.1} parent=1 // pred_check_branch
      %24 = sbr.rel (0) target = $region9
    $region8: #{tpu_custom_call.1} parent=1 // pred_region
      %26 = vsyncadd [#allocation3], 0
      %s27 = sshll.u32 %s1, 4
      %s28 = int_to_ptr.hbm [resolvable:$true] %s27
      %s29 = sshll.u32 [#allocation2], 4
      %s30 = int_to_ptr.vmem [resolvable:$true] %s29
      %35 = dma.hbm_to_vmem [thread:$0]  %s28, 576, %s30, [#allocation3], 64, 64, 4
    $region9: #{tpu_custom_call.1} parent=1 // pred_fallthru
      _
    // Predicated region
    $region10: #{tpu_custom_call.1} parent=1 // pred_check
      _
    $region11: #{tpu_custom_call.1} parent=1 // pred_check_branch
      %37 = sbr.rel (0) target = $region13
    $region12: #{tpu_custom_call.1} parent=1 // pred_region
      %39 = vsyncadd [#allocation6], 0
      %s41 = sshll.u32 %s2, 4
      %s42 = int_to_ptr.hbm [resolvable:$true] %s41
      %s43 = sshll.u32 [#allocation5], 4
      %s44 = int_to_ptr.vmem [resolvable:$true] %s43
      %46 = dma.hbm_to_vmem [thread:$0]  %s42, 16, %s44, [#allocation6]
    $region13: #{tpu_custom_call.1} parent=1 // pred_fallthru
      _
    // Predicated region
    $region14: #{tpu_custom_call.1} parent=1 // pred_check
      _
    $region15: #{tpu_custom_call.1} parent=1 // pred_check_branch
      %48 = sbr.rel (0) target = $region17
    $region16: #{tpu_custom_call.1} parent=1 // pred_region
      _
    $region17: #{tpu_custom_call.1} parent=1 // pred_fallthru
      _
    // Predicated region
    $region18: #{tpu_custom_call.1} parent=1 // pred_check
      _
    $region19: #{tpu_custom_call.1} parent=1 // pred_check_branch
      %50 = sbr.rel (0) target = $region21
    $region20: #{tpu_custom_call.1} parent=1 // pred_region
      _
    $region21: #{tpu_custom_call.1} parent=1 // pred_fallthru
      _
    // Predicated region
    $region22: #{tpu_custom_call.1} parent=1 // pred_check
      _
    $region23: #{tpu_custom_call.1} parent=1 // pred_check_branch
      %52 = sbr.rel (0) target = $region25
    $region24: #{tpu_custom_call.1} parent=1 // pred_region
      _
    $region25: #{tpu_custom_call.1} parent=1 // pred_fallthru
      _
    // Predicated region
    $region26: #{tpu_custom_call.1} parent=1 // pred_check
      _
    $region27: #{tpu_custom_call.1} parent=1 // pred_check_branch
      %54 = sbr.rel (0) target = $region29
    $region28: #{tpu_custom_call.1} parent=1 // pred_region
      _
    $region29: #{tpu_custom_call.1} parent=1 // pred_fallthru
      _
    // Predicated region
    $region30: #{tpu_custom_call.1} parent=1 // pred_check
      _
    $region31: #{tpu_custom_call.1} parent=1 // pred_check_branch
      %56 = sbr.rel (0) target = $region33
    $region32: #{tpu_custom_call.1} parent=1 // pred_region
      _
    $region33: #{tpu_custom_call.1} parent=1 // pred_fallthru
      _
    // Predicated region
    $region34: #{tpu_custom_call.1} parent=1 // pred_check
      _
    $region35: #{tpu_custom_call.1} parent=1 // pred_check_branch
      %58 = sbr.rel (0) target = $region37
    $region36: #{tpu_custom_call.1} parent=1 // pred_region
      _
    $region37: #{tpu_custom_call.1} parent=1 // pred_fallthru
      _
    // Predicated region
    $region38: #{tpu_custom_call.1} parent=1 // pred_check
      _
    $region39: #{tpu_custom_call.1} parent=1 // pred_check_branch
      %60 = sbr.rel (0) target = $region41
    $region40: #{tpu_custom_call.1} parent=1 // pred_region
      %62 = vsyncadd [#allocation6], 0
      %s63 = sshll.u32 %s9, 4
      %s64 = int_to_ptr.hbm [resolvable:$true] %s63
      %s65 = sshll.u32 [#allocation7], 4
      %s66 = int_to_ptr.vmem [resolvable:$true] %s65
      %71 = dma.hbm_to_vmem [thread:$0]  %s64, 8192, %s66, [#allocation6], 256, 256, 16
    $region41: #{tpu_custom_call.1} parent=1 // pred_fallthru
      _
    // Predicated region
    $region42: #{tpu_custom_call.1} parent=1 // pred_check
      _
    $region43: #{tpu_custom_call.1} parent=1 // pred_check_branch
      %73 = sbr.rel (0) target = $region45
    $region44: #{tpu_custom_call.1} parent=1 // pred_region
      _
    $region45: #{tpu_custom_call.1} parent=1 // pred_fallthru
      _
    // Predicated region
    $region46: #{tpu_custom_call.1} parent=1 // pred_check
      _
    $region47: #{tpu_custom_call.1} parent=1 // pred_check_branch
      %75 = sbr.rel (0) target = $region49
    $region48: #{tpu_custom_call.1} parent=1 // pred_region
      _
    $region49: #{tpu_custom_call.1} parent=1 // pred_fallthru
      _
    // Predicated region
    $region50: #{tpu_custom_call.1} parent=1 // pred_check
      _
    $region51: #{tpu_custom_call.1} parent=1 // pred_check_branch
      %77 = sbr.rel (0) target = $region53
    $region52: #{tpu_custom_call.1} parent=1 // pred_region
      _
    $region53: #{tpu_custom_call.1} parent=1 // pred_fallthru
      _
    // Predicated region
    $region54: #{tpu_custom_call.1} parent=1 // pred_check
      _
    $region55: #{tpu_custom_call.1} parent=1 // pred_check_branch
      %79 = sbr.rel (0) target = $region57
    $region56: #{tpu_custom_call.1} parent=1 // pred_region
      %81 = dma.done [#allocation3], 576
    $region57: #{tpu_custom_call.1} parent=1 // pred_fallthru
      _
    // Predicated region
    $region58: #{tpu_custom_call.1} parent=1 // pred_check
      _
    $region59: #{tpu_custom_call.1} parent=1 // pred_check_branch
      %83 = sbr.rel (0) target = $region61
    $region60: #{tpu_custom_call.1} parent=1 // pred_region
      %85 = dma.done [#allocation6], 16
    $region61: #{tpu_custom_call.1} parent=1 // pred_fallthru
      _
    // Predicated region
    $region62: #{tpu_custom_call.1} parent=1 // pred_check
      _
    $region63: #{tpu_custom_call.1} parent=1 // pred_check_branch
      %87 = sbr.rel (0) target = $region65
    $region64: #{tpu_custom_call.1} parent=1 // pred_region
      %89 = dma.done [#allocation6], 8192
    $region65: #{tpu_custom_call.1} parent=1 // pred_fallthru
      _
    %v91 = vld [vmem:[%s0] sm:$0xff]
    %v92 = vpack.c.bf16 %v91, %v91
    %v93 = vld [vmem:[#allocation2] sm:$0xf]
    %v94 = vld [vmem:[#allocation2 + $0x4] sm:$0xf]
    %v95 = vld [vmem:[#allocation2 + $0x8] sm:$0xf]
    %v96 = vld [vmem:[#allocation2 + $0xc] sm:$0xf]
    %v97 = vld [vmem:[#allocation2 + $0x10] sm:$0xf]
    %v98 = vld [vmem:[#allocation2 + $0x14] sm:$0xf]
    %v99 = vld [vmem:[#allocation2 + $0x18] sm:$0xf]
    %v100 = vld [vmem:[#allocation2 + $0x1c] sm:$0xf]
    %v101 = vld [vmem:[#allocation2 + $0x20] sm:$0x7]
    %v102 = vld [vmem:[#allocation5] sm:$0x1]
    %v104 = vperm.slane %v102, 0
    %v115 = vunpack.c.l.b16 %v93
    %v116 = vunpack.c.l.b16 %v94
    %v117 = vunpack.c.l.b16 %v95
    %v118 = vunpack.c.l.b16 %v96
    %v119 = vunpack.c.l.b16 %v97
    %v120 = vunpack.c.l.b16 %v98
    %v121 = vunpack.c.l.b16 %v99
    %v122 = vunpack.c.l.b16 %v100
    %v123 = vunpack.c.l.b16 %v101
    %v124 = vpack.c.b16 %v116, %v115
    %v125 = vpack.c.b16 %v118, %v117
    %v126 = vpack.c.b16 %v120, %v119
    %v127 = vpack.c.b16 %v122, %v121
    %v128 = vpack.c.b16 %v123, %v123
    %vm133 = vcmask 572416
    %v135 = vsel %vm133, %v92, 0
    %vm137 = vcmask 1042432
    %v139 = vsel %vm137, %v128, 0
    %141 = vmatpush.bf16.msra.mxu0 0
    %142 = vmatpush.bf16.msra.mxu0 0
    %143 = vmatpush.bf16.msra.mxu0 0
    %144 = vmatpush.bf16.msra.mxu0 %v139
    %145 = vmatpush.bf16.msra.mxu0 %v127
    %146 = vmatpush.bf16.msra.mxu0 %v126
    %147 = vmatpush.bf16.msra.mxu0 %v125
    %148 = vmatpush.bf16.msra.mxu0 %v124
    %149 = vmatmul.bf16.gmra.mxu0 %v135
    %v150 = vpop.f32.mrf.mxu0
    %v151 = vadd.f32 %v104, %v150
    %v152 = vpop.f32.mrf.mxu0
    %153 = vdwg.mxu0
    %v154 = vmax.f32 %v151, 0.0
    %v155 = vpack.c.bf16 %v154, %v154
    %v156 = vld [vmem:[%s3] sm:$0xff]
    %v157 = vld [vmem:[%s3 + $0x8] sm:$0xff]
    %v158 = vld [vmem:[%s3 + $0x10] sm:$0xff]
    %v159 = vld [vmem:[%s3 + $0x18] sm:$0xff]
    %v160 = vld [vmem:[%s3 + $0x20] sm:$0xff]
    %v161 = vld [vmem:[%s3 + $0x28] sm:$0xff]
    %v162 = vld [vmem:[%s3 + $0x30] sm:$0xff]
    %v163 = vld [vmem:[%s3 + $0x38] sm:$0xff]
    %v164 = vld [vmem:[%s3 + $0x40] sm:$0xff]
    %v165 = vld [vmem:[%s3 + $0x48] sm:$0xff]
    %v166 = vld [vmem:[%s3 + $0x50] sm:$0xff]
    %v167 = vld [vmem:[%s3 + $0x58] sm:$0xff]
    %v168 = vld [vmem:[%s3 + $0x60] sm:$0xff]
    %v169 = vld [vmem:[%s3 + $0x68] sm:$0xff]
    %v170 = vld [vmem:[%s3 + $0x70] sm:$0xff]
    %v171 = vld [vmem:[%s3 + $0x78] sm:$0xff]
    %v172 = vld [vmem:[%s4] sm:$0x3]
    %v174 = vperm.slane %v172, 0
    %v175 = vperm.slane %v172, 1
    %v194 = vunpack.c.l.b16 %v156
    %v195 = vunpack.c.h.b16 %v156
    %v196 = vunpack.c.l.b16 %v157
    %v197 = vunpack.c.h.b16 %v157
    %v198 = vunpack.c.l.b16 %v158
    %v199 = vunpack.c.h.b16 %v158
    %v200 = vunpack.c.l.b16 %v159
    %v201 = vunpack.c.h.b16 %v159
    %v202 = vunpack.c.l.b16 %v160
    %v203 = vunpack.c.h.b16 %v160
    %v204 = vunpack.c.l.b16 %v161
    %v205 = vunpack.c.h.b16 %v161
    %v206 = vunpack.c.l.b16 %v162
    %v207 = vunpack.c.h.b16 %v162
    %v208 = vunpack.c.l.b16 %v163
    %v209 = vunpack.c.h.b16 %v163
    %v210 = vunpack.c.l.b16 %v164
    %v211 = vunpack.c.h.b16 %v164
    %v212 = vunpack.c.l.b16 %v165
    %v213 = vunpack.c.h.b16 %v165
    %v214 = vunpack.c.l.b16 %v166
    %v215 = vunpack.c.h.b16 %v166
    %v216 = vunpack.c.l.b16 %v167
    %v217 = vunpack.c.h.b16 %v167
    %v218 = vunpack.c.l.b16 %v168
    %v219 = vunpack.c.h.b16 %v168
    %v220 = vunpack.c.l.b16 %v169
    %v221 = vunpack.c.h.b16 %v169
    %v222 = vunpack.c.l.b16 %v170
    %v223 = vunpack.c.h.b16 %v170
    %v224 = vunpack.c.l.b16 %v171
    %v225 = vunpack.c.h.b16 %v171
    %v226 = vpack.c.b16 %v196, %v194
    %v227 = vpack.c.b16 %v197, %v195
    %v228 = vpack.c.b16 %v200, %v198
    %v229 = vpack.c.b16 %v201, %v199
    %v230 = vpack.c.b16 %v204, %v202
    %v231 = vpack.c.b16 %v205, %v203
    %v232 = vpack.c.b16 %v208, %v206
    %v233 = vpack.c.b16 %v209, %v207
    %v234 = vpack.c.b16 %v212, %v210
    %v235 = vpack.c.b16 %v213, %v211
    %v236 = vpack.c.b16 %v216, %v214
    %v237 = vpack.c.b16 %v217, %v215
    %v238 = vpack.c.b16 %v220, %v218
    %v239 = vpack.c.b16 %v221, %v219
    %v240 = vpack.c.b16 %v224, %v222
    %v241 = vpack.c.b16 %v225, %v223
    %258 = vmatpush.bf16.msra.mxu0 %v240
    %259 = vmatpush.bf16.msra.mxu0 %v238
    %260 = vmatpush.bf16.msra.mxu0 %v236
    %261 = vmatpush.bf16.msra.mxu0 %v234
    %262 = vmatpush.bf16.msra.mxu0 %v232
    %263 = vmatpush.bf16.msra.mxu0 %v230
    %264 = vmatpush.bf16.msra.mxu0 %v228
    %265 = vmatpush.bf16.msra.mxu0 %v226
    %266 = vmatmul.bf16.gmra.mxu0 %v155
    %v267 = vpop.f32.mrf.mxu0
    %v268 = vadd.f32 %v174, %v267
    %v269 = vpop.f32.mrf.mxu0
    %270 = vdwg.mxu0
    %271 = vmatpush.bf16.msra.mxu0 %v241
    %272 = vmatpush.bf16.msra.mxu0 %v239
    %273 = vmatpush.bf16.msra.mxu0 %v237
    %274 = vmatpush.bf16.msra.mxu0 %v235
    %275 = vmatpush.bf16.msra.mxu0 %v233
    %276 = vmatpush.bf16.msra.mxu0 %v231
    %277 = vmatpush.bf16.msra.mxu0 %v229
    %278 = vmatpush.bf16.msra.mxu0 %v227
    %279 = vmatmul.bf16.gmra.mxu0 %v155
    %v280 = vpop.f32.mrf.mxu0
    %v281 = vadd.f32 %v175, %v280
    %v282 = vpop.f32.mrf.mxu0
    %283 = vdwg.mxu0
    %v284 = vmax.f32 %v268, 0.0
    %v285 = vmax.f32 %v281, 0.0
    %v286 = vpack.c.bf16 %v284, %v284
    %v287 = vpack.c.bf16 %v285, %v285
    %v288 = vld [vmem:[%s5] sm:$0xf]
    %v289 = vld [vmem:[%s5 + $0x4] sm:$0xf]
    %v290 = vld [vmem:[%s5 + $0x8] sm:$0xf]
    %v291 = vld [vmem:[%s5 + $0xc] sm:$0xf]
    %v292 = vld [vmem:[%s5 + $0x10] sm:$0xf]
    %v293 = vld [vmem:[%s5 + $0x14] sm:$0xf]
    %v294 = vld [vmem:[%s5 + $0x18] sm:$0xf]
    %v295 = vld [vmem:[%s5 + $0x1c] sm:$0xf]
    %v296 = vld [vmem:[%s5 + $0x20] sm:$0xf]
    %v297 = vld [vmem:[%s5 + $0x24] sm:$0xf]
    %v298 = vld [vmem:[%s5 + $0x28] sm:$0xf]
    %v299 = vld [vmem:[%s5 + $0x2c] sm:$0xf]
    %v300 = vld [vmem:[%s5 + $0x30] sm:$0xf]
    %v301 = vld [vmem:[%s5 + $0x34] sm:$0xf]
    %v302 = vld [vmem:[%s5 + $0x38] sm:$0xf]
    %v303 = vld [vmem:[%s5 + $0x3c] sm:$0xf]
    %v304 = vld [vmem:[%s5 + $0x40] sm:$0xf]
    %v305 = vld [vmem:[%s5 + $0x44] sm:$0xf]
    %v306 = vld [vmem:[%s5 + $0x48] sm:$0xf]
    %v307 = vld [vmem:[%s5 + $0x4c] sm:$0xf]
    %v308 = vld [vmem:[%s5 + $0x50] sm:$0xf]
    %v309 = vld [vmem:[%s5 + $0x54] sm:$0xf]
    %v310 = vld [vmem:[%s5 + $0x58] sm:$0xf]
    %v311 = vld [vmem:[%s5 + $0x5c] sm:$0xf]
    %v312 = vld [vmem:[%s5 + $0x60] sm:$0xf]
    %v313 = vld [vmem:[%s5 + $0x64] sm:$0xf]
    %v314 = vld [vmem:[%s5 + $0x68] sm:$0xf]
    %v315 = vld [vmem:[%s5 + $0x6c] sm:$0xf]
    %v316 = vld [vmem:[%s5 + $0x70] sm:$0xf]
    %v317 = vld [vmem:[%s5 + $0x74] sm:$0xf]
    %v318 = vld [vmem:[%s5 + $0x78] sm:$0xf]
    %v319 = vld [vmem:[%s5 + $0x7c] sm:$0xf]
    %v320 = vld [vmem:[%s6] sm:$0x1]
    %v322 = vperm.slane %v320, 0
    %v356 = vunpack.c.l.b16 %v288
    %v357 = vunpack.c.l.b16 %v289
    %v358 = vunpack.c.l.b16 %v290
    %v359 = vunpack.c.l.b16 %v291
    %v360 = vunpack.c.l.b16 %v292
    %v361 = vunpack.c.l.b16 %v293
    %v362 = vunpack.c.l.b16 %v294
    %v363 = vunpack.c.l.b16 %v295
    %v364 = vunpack.c.l.b16 %v296
    %v365 = vunpack.c.l.b16 %v297
    %v366 = vunpack.c.l.b16 %v298
    %v367 = vunpack.c.l.b16 %v299
    %v368 = vunpack.c.l.b16 %v300
    %v369 = vunpack.c.l.b16 %v301
    %v370 = vunpack.c.l.b16 %v302
    %v371 = vunpack.c.l.b16 %v303
    %v372 = vunpack.c.l.b16 %v304
    %v373 = vunpack.c.l.b16 %v305
    %v374 = vunpack.c.l.b16 %v306
    %v375 = vunpack.c.l.b16 %v307
    %v376 = vunpack.c.l.b16 %v308
    %v377 = vunpack.c.l.b16 %v309
    %v378 = vunpack.c.l.b16 %v310
    %v379 = vunpack.c.l.b16 %v311
    %v380 = vunpack.c.l.b16 %v312
    %v381 = vunpack.c.l.b16 %v313
    %v382 = vunpack.c.l.b16 %v314
    %v383 = vunpack.c.l.b16 %v315
    %v384 = vunpack.c.l.b16 %v316
    %v385 = vunpack.c.l.b16 %v317
    %v386 = vunpack.c.l.b16 %v318
    %v387 = vunpack.c.l.b16 %v319
    %v388 = vpack.c.b16 %v357, %v356
    %v389 = vpack.c.b16 %v359, %v358
    %v390 = vpack.c.b16 %v361, %v360
    %v391 = vpack.c.b16 %v363, %v362
    %v392 = vpack.c.b16 %v365, %v364
    %v393 = vpack.c.b16 %v367, %v366
    %v394 = vpack.c.b16 %v369, %v368
    %v395 = vpack.c.b16 %v371, %v370
    %v396 = vpack.c.b16 %v373, %v372
    %v397 = vpack.c.b16 %v375, %v374
    %v398 = vpack.c.b16 %v377, %v376
    %v399 = vpack.c.b16 %v379, %v378
    %v400 = vpack.c.b16 %v381, %v380
    %v401 = vpack.c.b16 %v383, %v382
    %v402 = vpack.c.b16 %v385, %v384
    %v403 = vpack.c.b16 %v387, %v386
    %420 = vmatpush.bf16.msra.mxu0 %v395
    %421 = vmatpush.bf16.msra.mxu0 %v394
    %422 = vmatpush.bf16.msra.mxu0 %v393
    %423 = vmatpush.bf16.msra.mxu0 %v392
    %424 = vmatpush.bf16.msra.mxu0 %v391
    %425 = vmatpush.bf16.msra.mxu0 %v390
    %426 = vmatpush.bf16.msra.mxu0 %v389
    %427 = vmatpush.bf16.msra.mxu0 %v388
    %428 = vmatmul.bf16.gmra.mxu0 %v286
    %v429 = vpop.f32.mrf.mxu0
    %v430 = vadd.f32 %v322, %v429
    %v431 = vpop.f32.mrf.mxu0
    %432 = vdwg.mxu0
    %433 = vmatpush.bf16.msra.mxu0 %v403
    %434 = vmatpush.bf16.msra.mxu0 %v402
    %435 = vmatpush.bf16.msra.mxu0 %v401
    %436 = vmatpush.bf16.msra.mxu0 %v400
    %437 = vmatpush.bf16.msra.mxu0 %v399
    %438 = vmatpush.bf16.msra.mxu0 %v398
    %439 = vmatpush.bf16.msra.mxu0 %v397
    %440 = vmatpush.bf16.msra.mxu0 %v396
    %441 = vmatmul.bf16.gmra.mxu0 %v287
    %v442 = vpop.f32.mrf.mxu0
    %v443 = vadd.f32 %v430, %v442
    %v444 = vpop.f32.mrf.mxu0
    %445 = vdwg.mxu0
    %v446 = vsub.f32 0.0, %v443
    %v447 = vmul.f32 %v446, 1.442695
    %v448 = vpow.pop %v447
    %v449 = vadd.f32 %v448, 1.0
    %v450 = vrcp.pop %v449
    %v451 = vpack.c.bf16 %v450, %v450
    %v452 = vld [vmem:[%s7] sm:$0xff]
    %v453 = vld [vmem:[%s7 + $0x8] sm:$0xff]
    %v454 = vld [vmem:[%s7 + $0x10] sm:$0xff]
    %v455 = vld [vmem:[%s7 + $0x18] sm:$0xff]
    %v456 = vld [vmem:[%s7 + $0x20] sm:$0xff]
    %v457 = vld [vmem:[%s7 + $0x28] sm:$0xff]
    %v458 = vld [vmem:[%s7 + $0x30] sm:$0xff]
    %v459 = vld [vmem:[%s7 + $0x38] sm:$0xff]
    %v460 = vld [vmem:[%s7 + $0x40] sm:$0xff]
    %v461 = vld [vmem:[%s7 + $0x48] sm:$0xff]
    %v462 = vld [vmem:[%s7 + $0x50] sm:$0xff]
    %v463 = vld [vmem:[%s7 + $0x58] sm:$0xff]
    %v464 = vld [vmem:[%s7 + $0x60] sm:$0xff]
    %v465 = vld [vmem:[%s7 + $0x68] sm:$0xff]
    %v466 = vld [vmem:[%s7 + $0x70] sm:$0xff]
    %v467 = vld [vmem:[%s7 + $0x78] sm:$0xff]
    %v468 = vld [vmem:[%s8] sm:$0x3]
    %v470 = vperm.slane %v468, 0
    %v471 = vperm.slane %v468, 1
    %v490 = vunpack.c.l.b16 %v452
    %v491 = vunpack.c.h.b16 %v452
    %v492 = vunpack.c.l.b16 %v453
    %v493 = vunpack.c.h.b16 %v453
    %v494 = vunpack.c.l.b16 %v454
    %v495 = vunpack.c.h.b16 %v454
    %v496 = vunpack.c.l.b16 %v455
    %v497 = vunpack.c.h.b16 %v455
    %v498 = vunpack.c.l.b16 %v456
    %v499 = vunpack.c.h.b16 %v456
    %v500 = vunpack.c.l.b16 %v457
    %v501 = vunpack.c.h.b16 %v457
    %v502 = vunpack.c.l.b16 %v458
    %v503 = vunpack.c.h.b16 %v458
    %v504 = vunpack.c.l.b16 %v459
    %v505 = vunpack.c.h.b16 %v459
    %v506 = vunpack.c.l.b16 %v460
    %v507 = vunpack.c.h.b16 %v460
    %v508 = vunpack.c.l.b16 %v461
    %v509 = vunpack.c.h.b16 %v461
    %v510 = vunpack.c.l.b16 %v462
    %v511 = vunpack.c.h.b16 %v462
    %v512 = vunpack.c.l.b16 %v463
    %v513 = vunpack.c.h.b16 %v463
    %v514 = vunpack.c.l.b16 %v464
    %v515 = vunpack.c.h.b16 %v464
    %v516 = vunpack.c.l.b16 %v465
    %v517 = vunpack.c.h.b16 %v465
    %v518 = vunpack.c.l.b16 %v466
    %v519 = vunpack.c.h.b16 %v466
    %v520 = vunpack.c.l.b16 %v467
    %v521 = vunpack.c.h.b16 %v467
    %v522 = vpack.c.b16 %v492, %v490
    %v523 = vpack.c.b16 %v493, %v491
    %v524 = vpack.c.b16 %v496, %v494
    %v525 = vpack.c.b16 %v497, %v495
    %v526 = vpack.c.b16 %v500, %v498
    %v527 = vpack.c.b16 %v501, %v499
    %v528 = vpack.c.b16 %v504, %v502
    %v529 = vpack.c.b16 %v505, %v503
    %v530 = vpack.c.b16 %v508, %v506
    %v531 = vpack.c.b16 %v509, %v507
    %v532 = vpack.c.b16 %v512, %v510
    %v533 = vpack.c.b16 %v513, %v511
    %v534 = vpack.c.b16 %v516, %v514
    %v535 = vpack.c.b16 %v517, %v515
    %v536 = vpack.c.b16 %v520, %v518
    %v537 = vpack.c.b16 %v521, %v519
    %554 = vmatpush.bf16.msra.mxu0 %v536
    %555 = vmatpush.bf16.msra.mxu0 %v534
    %556 = vmatpush.bf16.msra.mxu0 %v532
    %557 = vmatpush.bf16.msra.mxu0 %v530
    %558 = vmatpush.bf16.msra.mxu0 %v528
    %559 = vmatpush.bf16.msra.mxu0 %v526
    %560 = vmatpush.bf16.msra.mxu0 %v524
    %561 = vmatpush.bf16.msra.mxu0 %v522
    %562 = vmatmul.bf16.gmra.mxu0 %v451
    %v563 = vpop.f32.mrf.mxu0
    %v564 = vadd.f32 %v470, %v563
    %v565 = vpop.f32.mrf.mxu0
    %566 = vdwg.mxu0
    %567 = vmatpush.bf16.msra.mxu0 %v537
    %568 = vmatpush.bf16.msra.mxu0 %v535
    %569 = vmatpush.bf16.msra.mxu0 %v533
    %570 = vmatpush.bf16.msra.mxu0 %v531
    %571 = vmatpush.bf16.msra.mxu0 %v529
    %572 = vmatpush.bf16.msra.mxu0 %v527
    %573 = vmatpush.bf16.msra.mxu0 %v525
    %574 = vmatpush.bf16.msra.mxu0 %v523
    %575 = vmatmul.bf16.gmra.mxu0 %v451
    %v576 = vpop.f32.mrf.mxu0
    %v577 = vadd.f32 %v471, %v576
    %v578 = vpop.f32.mrf.mxu0
    %579 = vdwg.mxu0
    %v580 = vmax.f32 %v564, 0.0
    %v581 = vmax.f32 %v577, 0.0
    %v582 = vpack.c.bf16 %v580, %v580
    %v583 = vpack.c.bf16 %v581, %v581
    %v584 = vld [vmem:[#allocation7] sm:$0xff]
    %v585 = vld [vmem:[#allocation7 + $0x8] sm:$0xff]
    %v586 = vld [vmem:[#allocation7 + $0x10] sm:$0xff]
    %v587 = vld [vmem:[#allocation7 + $0x18] sm:$0xff]
    %v588 = vld [vmem:[#allocation7 + $0x20] sm:$0xff]
    %v589 = vld [vmem:[#allocation7 + $0x28] sm:$0xff]
    %v590 = vld [vmem:[#allocation7 + $0x30] sm:$0xff]
    %v591 = vld [vmem:[#allocation7 + $0x38] sm:$0xff]
    %v592 = vld [vmem:[#allocation7 + $0x40] sm:$0xff]
    %v593 = vld [vmem:[#allocation7 + $0x48] sm:$0xff]
    %v594 = vld [vmem:[#allocation7 + $0x50] sm:$0xff]
    %v595 = vld [vmem:[#allocation7 + $0x58] sm:$0xff]
    %v596 = vld [vmem:[#allocation7 + $0x60] sm:$0xff]
    %v597 = vld [vmem:[#allocation7 + $0x68] sm:$0xff]
    %v598 = vld [vmem:[#allocation7 + $0x70] sm:$0xff]
    %v599 = vld [vmem:[#allocation7 + $0x78] sm:$0xff]
    %v600 = vld [vmem:[#allocation7 + $0x80] sm:$0xff]
    %v601 = vld [vmem:[#allocation7 + $0x88] sm:$0xff]
    %v602 = vld [vmem:[#allocation7 + $0x90] sm:$0xff]
    %v603 = vld [vmem:[#allocation7 + $0x98] sm:$0xff]
    %v604 = vld [vmem:[#allocation7 + $0xa0] sm:$0xff]
    %v605 = vld [vmem:[#allocation7 + $0xa8] sm:$0xff]
    %v606 = vld [vmem:[#allocation7 + $0xb0] sm:$0xff]
    %v607 = vld [vmem:[#allocation7 + $0xb8] sm:$0xff]
    %v608 = vld [vmem:[#allocation7 + $0xc0] sm:$0xff]
    %v609 = vld [vmem:[#allocation7 + $0xc8] sm:$0xff]
    %v610 = vld [vmem:[#allocation7 + $0xd0] sm:$0xff]
    %v611 = vld [vmem:[#allocation7 + $0xd8] sm:$0xff]
    %v612 = vld [vmem:[#allocation7 + $0xe0] sm:$0xff]
    %v613 = vld [vmem:[#allocation7 + $0xe8] sm:$0xff]
    %v614 = vld [vmem:[#allocation7 + $0xf0] sm:$0xff]
    %v615 = vld [vmem:[#allocation7 + $0xf8] sm:$0xff]
    %v616 = vld [vmem:[#allocation7 + $0x100] sm:$0xff]
    %v617 = vld [vmem:[#allocation7 + $0x108] sm:$0xff]
    %v618 = vld [vmem:[#allocation7 + $0x110] sm:$0xff]
    %v619 = vld [vmem:[#allocation7 + $0x118] sm:$0xff]
    %v620 = vld [vmem:[#allocation7 + $0x120] sm:$0xff]
    %v621 = vld [vmem:[#allocation7 + $0x128] sm:$0xff]
    %v622 = vld [vmem:[#allocation7 + $0x130] sm:$0xff]
    %v623 = vld [vmem:[#allocation7 + $0x138] sm:$0xff]
    %v624 = vld [vmem:[#allocation7 + $0x140] sm:$0xff]
    %v625 = vld [vmem:[#allocation7 + $0x148] sm:$0xff]
    %v626 = vld [vmem:[#allocation7 + $0x150] sm:$0xff]
    %v627 = vld [vmem:[#allocation7 + $0x158] sm:$0xff]
    %v628 = vld [vmem:[#allocation7 + $0x160] sm:$0xff]
    %v629 = vld [vmem:[#allocation7 + $0x168] sm:$0xff]
    %v630 = vld [vmem:[#allocation7 + $0x170] sm:$0xff]
    %v631 = vld [vmem:[#allocation7 + $0x178] sm:$0xff]
    %v632 = vld [vmem:[#allocation7 + $0x180] sm:$0xff]
    %v633 = vld [vmem:[#allocation7 + $0x188] sm:$0xff]
    %v634 = vld [vmem:[#allocation7 + $0x190] sm:$0xff]
    %v635 = vld [vmem:[#allocation7 + $0x198] sm:$0xff]
    %v636 = vld [vmem:[#allocation7 + $0x1a0] sm:$0xff]
    %v637 = vld [vmem:[#allocation7 + $0x1a8] sm:$0xff]
    %v638 = vld [vmem:[#allocation7 + $0x1b0] sm:$0xff]
    %v639 = vld [vmem:[#allocation7 + $0x1b8] sm:$0xff]
    %v640 = vld [vmem:[#allocation7 + $0x1c0] sm:$0xff]
    %v641 = vld [vmem:[#allocation7 + $0x1c8] sm:$0xff]
    %v642 = vld [vmem:[#allocation7 + $0x1d0] sm:$0xff]
    %v643 = vld [vmem:[#allocation7 + $0x1d8] sm:$0xff]
    %v644 = vld [vmem:[#allocation7 + $0x1e0] sm:$0xff]
    %v645 = vld [vmem:[#allocation7 + $0x1e8] sm:$0xff]
    %v646 = vld [vmem:[#allocation7 + $0x1f0] sm:$0xff]
    %v647 = vld [vmem:[#allocation7 + $0x1f8] sm:$0xff]
    %v648 = vld [vmem:[%s10] sm:$0xf]
    %v650 = vperm.slane %v648, 0
    %v651 = vperm.slane %v648, 1
    %v652 = vperm.slane %v648, 2
    %v653 = vperm.slane %v648, 3
    %v722 = vunpack.c.l.b16 %v584
    %v723 = vunpack.c.h.b16 %v584
    %v724 = vunpack.c.l.b16 %v585
    %v725 = vunpack.c.h.b16 %v585
    %v726 = vunpack.c.l.b16 %v586
    %v727 = vunpack.c.h.b16 %v586
    %v728 = vunpack.c.l.b16 %v587
    %v729 = vunpack.c.h.b16 %v587
    %v730 = vunpack.c.l.b16 %v588
    %v731 = vunpack.c.h.b16 %v588
    %v732 = vunpack.c.l.b16 %v589
    %v733 = vunpack.c.h.b16 %v589
    %v734 = vunpack.c.l.b16 %v590
    %v735 = vunpack.c.h.b16 %v590
    %v736 = vunpack.c.l.b16 %v591
    %v737 = vunpack.c.h.b16 %v591
    %v738 = vunpack.c.l.b16 %v592
    %v739 = vunpack.c.h.b16 %v592
    %v740 = vunpack.c.l.b16 %v593
    %v741 = vunpack.c.h.b16 %v593
    %v742 = vunpack.c.l.b16 %v594
    %v743 = vunpack.c.h.b16 %v594
    %v744 = vunpack.c.l.b16 %v595
    %v745 = vunpack.c.h.b16 %v595
    %v746 = vunpack.c.l.b16 %v596
    %v747 = vunpack.c.h.b16 %v596
    %v748 = vunpack.c.l.b16 %v597
    %v749 = vunpack.c.h.b16 %v597
    %v750 = vunpack.c.l.b16 %v598
    %v751 = vunpack.c.h.b16 %v598
    %v752 = vunpack.c.l.b16 %v599
    %v753 = vunpack.c.h.b16 %v599
    %v754 = vunpack.c.l.b16 %v600
    %v755 = vunpack.c.h.b16 %v600
    %v756 = vunpack.c.l.b16 %v601
    %v757 = vunpack.c.h.b16 %v601
    %v758 = vunpack.c.l.b16 %v602
    %v759 = vunpack.c.h.b16 %v602
    %v760 = vunpack.c.l.b16 %v603
    %v761 = vunpack.c.h.b16 %v603
    %v762 = vunpack.c.l.b16 %v604
    %v763 = vunpack.c.h.b16 %v604
    %v764 = vunpack.c.l.b16 %v605
    %v765 = vunpack.c.h.b16 %v605
    %v766 = vunpack.c.l.b16 %v606
    %v767 = vunpack.c.h.b16 %v606
    %v768 = vunpack.c.l.b16 %v607
    %v769 = vunpack.c.h.b16 %v607
    %v770 = vunpack.c.l.b16 %v608
    %v771 = vunpack.c.h.b16 %v608
    %v772 = vunpack.c.l.b16 %v609
    %v773 = vunpack.c.h.b16 %v609
    %v774 = vunpack.c.l.b16 %v610
    %v775 = vunpack.c.h.b16 %v610
    %v776 = vunpack.c.l.b16 %v611
    %v777 = vunpack.c.h.b16 %v611
    %v778 = vunpack.c.l.b16 %v612
    %v779 = vunpack.c.h.b16 %v612
    %v780 = vunpack.c.l.b16 %v613
    %v781 = vunpack.c.h.b16 %v613
    %v782 = vunpack.c.l.b16 %v614
    %v783 = vunpack.c.h.b16 %v614
    %v784 = vunpack.c.l.b16 %v615
    %v785 = vunpack.c.h.b16 %v615
    %v786 = vunpack.c.l.b16 %v616
    %v787 = vunpack.c.h.b16 %v616
    %v788 = vunpack.c.l.b16 %v617
    %v789 = vunpack.c.h.b16 %v617
    %v790 = vunpack.c.l.b16 %v618
    %v791 = vunpack.c.h.b16 %v618
    %v792 = vunpack.c.l.b16 %v619
    %v793 = vunpack.c.h.b16 %v619
    %v794 = vunpack.c.l.b16 %v620
    %v795 = vunpack.c.h.b16 %v620
    %v796 = vunpack.c.l.b16 %v621
    %v797 = vunpack.c.h.b16 %v621
    %v798 = vunpack.c.l.b16 %v622
    %v799 = vunpack.c.h.b16 %v622
    %v800 = vunpack.c.l.b16 %v623
    %v801 = vunpack.c.h.b16 %v623
    %v802 = vunpack.c.l.b16 %v624
    %v803 = vunpack.c.h.b16 %v624
    %v804 = vunpack.c.l.b16 %v625
    %v805 = vunpack.c.h.b16 %v625
    %v806 = vunpack.c.l.b16 %v626
    %v807 = vunpack.c.h.b16 %v626
    %v808 = vunpack.c.l.b16 %v627
    %v809 = vunpack.c.h.b16 %v627
    %v810 = vunpack.c.l.b16 %v628
    %v811 = vunpack.c.h.b16 %v628
    %v812 = vunpack.c.l.b16 %v629
    %v813 = vunpack.c.h.b16 %v629
    %v814 = vunpack.c.l.b16 %v630
    %v815 = vunpack.c.h.b16 %v630
    %v816 = vunpack.c.l.b16 %v631
    %v817 = vunpack.c.h.b16 %v631
    %v818 = vunpack.c.l.b16 %v632
    %v819 = vunpack.c.h.b16 %v632
    %v820 = vunpack.c.l.b16 %v633
    %v821 = vunpack.c.h.b16 %v633
    %v822 = vunpack.c.l.b16 %v634
    %v823 = vunpack.c.h.b16 %v634
    %v824 = vunpack.c.l.b16 %v635
    %v825 = vunpack.c.h.b16 %v635
    %v826 = vunpack.c.l.b16 %v636
    %v827 = vunpack.c.h.b16 %v636
    %v828 = vunpack.c.l.b16 %v637
    %v829 = vunpack.c.h.b16 %v637
    %v830 = vunpack.c.l.b16 %v638
    %v831 = vunpack.c.h.b16 %v638
    %v832 = vunpack.c.l.b16 %v639
    %v833 = vunpack.c.h.b16 %v639
    %v834 = vunpack.c.l.b16 %v640
    %v835 = vunpack.c.h.b16 %v640
    %v836 = vunpack.c.l.b16 %v641
    %v837 = vunpack.c.h.b16 %v641
    %v838 = vunpack.c.l.b16 %v642
    %v839 = vunpack.c.h.b16 %v642
    %v840 = vunpack.c.l.b16 %v643
    %v841 = vunpack.c.h.b16 %v643
    %v842 = vunpack.c.l.b16 %v644
    %v843 = vunpack.c.h.b16 %v644
    %v844 = vunpack.c.l.b16 %v645
    %v845 = vunpack.c.h.b16 %v645
    %v846 = vunpack.c.l.b16 %v646
    %v847 = vunpack.c.h.b16 %v646
    %v848 = vunpack.c.l.b16 %v647
    %v849 = vunpack.c.h.b16 %v647
    %v850 = vpack.c.b16 %v726, %v722
    %v851 = vpack.c.b16 %v727, %v723
    %v852 = vpack.c.b16 %v728, %v724
    %v853 = vpack.c.b16 %v729, %v725
    %v854 = vpack.c.b16 %v734, %v730
    %v855 = vpack.c.b16 %v735, %v731
    %v856 = vpack.c.b16 %v736, %v732
    %v857 = vpack.c.b16 %v737, %v733
    %v858 = vpack.c.b16 %v742, %v738
    %v859 = vpack.c.b16 %v743, %v739
    %v860 = vpack.c.b16 %v744, %v740
    %v861 = vpack.c.b16 %v745, %v741
    %v862 = vpack.c.b16 %v750, %v746
    %v863 = vpack.c.b16 %v751, %v747
    %v864 = vpack.c.b16 %v752, %v748
    %v865 = vpack.c.b16 %v753, %v749
    %v866 = vpack.c.b16 %v758, %v754
    %v867 = vpack.c.b16 %v759, %v755
    %v868 = vpack.c.b16 %v760, %v756
    %v869 = vpack.c.b16 %v761, %v757
    %v870 = vpack.c.b16 %v766, %v762
    %v871 = vpack.c.b16 %v767, %v763
    %v872 = vpack.c.b16 %v768, %v764
    %v873 = vpack.c.b16 %v769, %v765
    %v874 = vpack.c.b16 %v774, %v770
    %v875 = vpack.c.b16 %v775, %v771
    %v876 = vpack.c.b16 %v776, %v772
    %v877 = vpack.c.b16 %v777, %v773
    %v878 = vpack.c.b16 %v782, %v778
    %v879 = vpack.c.b16 %v783, %v779
    %v880 = vpack.c.b16 %v784, %v780
    %v881 = vpack.c.b16 %v785, %v781
    %v882 = vpack.c.b16 %v790, %v786
    %v883 = vpack.c.b16 %v791, %v787
    %v884 = vpack.c.b16 %v792, %v788
    %v885 = vpack.c.b16 %v793, %v789
    %v886 = vpack.c.b16 %v798, %v794
    %v887 = vpack.c.b16 %v799, %v795
    %v888 = vpack.c.b16 %v800, %v796
    %v889 = vpack.c.b16 %v801, %v797
    %v890 = vpack.c.b16 %v806, %v802
    %v891 = vpack.c.b16 %v807, %v803
    %v892 = vpack.c.b16 %v808, %v804
    %v893 = vpack.c.b16 %v809, %v805
    %v894 = vpack.c.b16 %v814, %v810
    %v895 = vpack.c.b16 %v815, %v811
    %v896 = vpack.c.b16 %v816, %v812
    %v897 = vpack.c.b16 %v817, %v813
    %v898 = vpack.c.b16 %v822, %v818
    %v899 = vpack.c.b16 %v823, %v819
    %v900 = vpack.c.b16 %v824, %v820
    %v901 = vpack.c.b16 %v825, %v821
    %v902 = vpack.c.b16 %v830, %v826
    %v903 = vpack.c.b16 %v831, %v827
    %v904 = vpack.c.b16 %v832, %v828
    %v905 = vpack.c.b16 %v833, %v829
    %v906 = vpack.c.b16 %v838, %v834
    %v907 = vpack.c.b16 %v839, %v835
    %v908 = vpack.c.b16 %v840, %v836
    %v909 = vpack.c.b16 %v841, %v837
    %v910 = vpack.c.b16 %v846, %v842
    %v911 = vpack.c.b16 %v847, %v843
    %v912 = vpack.c.b16 %v848, %v844
    %v913 = vpack.c.b16 %v849, %v845
    %978 = vmatpush.bf16.msra.mxu0 %v878
    %979 = vmatpush.bf16.msra.mxu0 %v874
    %980 = vmatpush.bf16.msra.mxu0 %v870
    %981 = vmatpush.bf16.msra.mxu0 %v866
    %982 = vmatpush.bf16.msra.mxu0 %v862
    %983 = vmatpush.bf16.msra.mxu0 %v858
    %984 = vmatpush.bf16.msra.mxu0 %v854
    %985 = vmatpush.bf16.msra.mxu0 %v850
    %986 = vmatmul.bf16.gmra.mxu0 %v582
    %v987 = vpop.f32.mrf.mxu0
    %v988 = vadd.f32 %v650, %v987
    %v989 = vpop.f32.mrf.mxu0
    %990 = vdwg.mxu0
    %991 = vmatpush.bf16.msra.mxu0 %v910
    %992 = vmatpush.bf16.msra.mxu0 %v906
    %993 = vmatpush.bf16.msra.mxu0 %v902
    %994 = vmatpush.bf16.msra.mxu0 %v898
    %995 = vmatpush.bf16.msra.mxu0 %v894
    %996 = vmatpush.bf16.msra.mxu0 %v890
    %997 = vmatpush.bf16.msra.mxu0 %v886
    %998 = vmatpush.bf16.msra.mxu0 %v882
    %999 = vmatmul.bf16.gmra.mxu0 %v583
    %v1000 = vpop.f32.mrf.mxu0
    %v1001 = vadd.f32 %v988, %v1000
    %v1002 = vpop.f32.mrf.mxu0
    %1003 = vdwg.mxu0
    %1004 = vmatpush.bf16.msra.mxu0 %v879
    %1005 = vmatpush.bf16.msra.mxu0 %v875
    %1006 = vmatpush.bf16.msra.mxu0 %v871
    %1007 = vmatpush.bf16.msra.mxu0 %v867
    %1008 = vmatpush.bf16.msra.mxu0 %v863
    %1009 = vmatpush.bf16.msra.mxu0 %v859
    %1010 = vmatpush.bf16.msra.mxu0 %v855
    %1011 = vmatpush.bf16.msra.mxu0 %v851
    %1012 = vmatmul.bf16.gmra.mxu0 %v582
    %v1013 = vpop.f32.mrf.mxu0
    %v1014 = vadd.f32 %v651, %v1013
    %v1015 = vpop.f32.mrf.mxu0
    %1016 = vdwg.mxu0
    %1017 = vmatpush.bf16.msra.mxu0 %v911
    %1018 = vmatpush.bf16.msra.mxu0 %v907
    %1019 = vmatpush.bf16.msra.mxu0 %v903
    %1020 = vmatpush.bf16.msra.mxu0 %v899
    %1021 = vmatpush.bf16.msra.mxu0 %v895
    %1022 = vmatpush.bf16.msra.mxu0 %v891
    %1023 = vmatpush.bf16.msra.mxu0 %v887
    %1024 = vmatpush.bf16.msra.mxu0 %v883
    %1025 = vmatmul.bf16.gmra.mxu0 %v583
    %v1026 = vpop.f32.mrf.mxu0
    %v1027 = vadd.f32 %v1014, %v1026
    %v1028 = vpop.f32.mrf.mxu0
    %1029 = vdwg.mxu0
    %1030 = vmatpush.bf16.msra.mxu0 %v880
    %1031 = vmatpush.bf16.msra.mxu0 %v876
    %1032 = vmatpush.bf16.msra.mxu0 %v872
    %1033 = vmatpush.bf16.msra.mxu0 %v868
    %1034 = vmatpush.bf16.msra.mxu0 %v864
    %1035 = vmatpush.bf16.msra.mxu0 %v860
    %1036 = vmatpush.bf16.msra.mxu0 %v856
    %1037 = vmatpush.bf16.msra.mxu0 %v852
    %1038 = vmatmul.bf16.gmra.mxu0 %v582
    %v1039 = vpop.f32.mrf.mxu0
    %v1040 = vadd.f32 %v652, %v1039
    %v1041 = vpop.f32.mrf.mxu0
    %1042 = vdwg.mxu0
    %1043 = vmatpush.bf16.msra.mxu0 %v912
    %1044 = vmatpush.bf16.msra.mxu0 %v908
    %1045 = vmatpush.bf16.msra.mxu0 %v904
    %1046 = vmatpush.bf16.msra.mxu0 %v900
    %1047 = vmatpush.bf16.msra.mxu0 %v896
    %1048 = vmatpush.bf16.msra.mxu0 %v892
    %1049 = vmatpush.bf16.msra.mxu0 %v888
    %1050 = vmatpush.bf16.msra.mxu0 %v884
    %1051 = vmatmul.bf16.gmra.mxu0 %v583
    %v1052 = vpop.f32.mrf.mxu0
    %v1053 = vadd.f32 %v1040, %v1052
    %v1054 = vpop.f32.mrf.mxu0
    %1055 = vdwg.mxu0
    %1056 = vmatpush.bf16.msra.mxu0 %v881
    %1057 = vmatpush.bf16.msra.mxu0 %v877
    %1058 = vmatpush.bf16.msra.mxu0 %v873
    %1059 = vmatpush.bf16.msra.mxu0 %v869
    %1060 = vmatpush.bf16.msra.mxu0 %v865
    %1061 = vmatpush.bf16.msra.mxu0 %v861
    %1062 = vmatpush.bf16.msra.mxu0 %v857
    %1063 = vmatpush.bf16.msra.mxu0 %v853
    %1064 = vmatmul.bf16.gmra.mxu0 %v582
    %v1065 = vpop.f32.mrf.mxu0
    %v1066 = vadd.f32 %v653, %v1065
    %v1067 = vpop.f32.mrf.mxu0
    %1068 = vdwg.mxu0
    %1069 = vmatpush.bf16.msra.mxu0 %v913
    %1070 = vmatpush.bf16.msra.mxu0 %v909
    %1071 = vmatpush.bf16.msra.mxu0 %v905
    %1072 = vmatpush.bf16.msra.mxu0 %v901
    %1073 = vmatpush.bf16.msra.mxu0 %v897
    %1074 = vmatpush.bf16.msra.mxu0 %v893
    %1075 = vmatpush.bf16.msra.mxu0 %v889
    %1076 = vmatpush.bf16.msra.mxu0 %v885
    %1077 = vmatmul.bf16.gmra.mxu0 %v583
    %v1078 = vpop.f32.mrf.mxu0
    %v1079 = vadd.f32 %v1066, %v1078
    %v1080 = vpop.f32.mrf.mxu0
    %1081 = vdwg.mxu0
    %v1082 = vmax.f32 %v1001, 0.0
    %v1083 = vmax.f32 %v1027, 0.0
    %v1084 = vmax.f32 %v1053, 0.0
    %v1085 = vmax.f32 %v1079, 0.0
    %v1086 = vpack.c.bf16 %v1082, %v1082
    %v1087 = vpack.c.bf16 %v1083, %v1083
    %v1088 = vpack.c.bf16 %v1084, %v1084
    %v1089 = vpack.c.bf16 %v1085, %v1085
    %v1090 = vld [vmem:[%s11] sm:$0xf]
    %v1091 = vld [vmem:[%s11 + $0x4] sm:$0xf]
    %v1092 = vld [vmem:[%s11 + $0x8] sm:$0xf]
    %v1093 = vld [vmem:[%s11 + $0xc] sm:$0xf]
    %v1094 = vld [vmem:[%s11 + $0x10] sm:$0xf]
    %v1095 = vld [vmem:[%s11 + $0x14] sm:$0xf]
    %v1096 = vld [vmem:[%s11 + $0x18] sm:$0xf]
    %v1097 = vld [vmem:[%s11 + $0x1c] sm:$0xf]
    %v1098 = vld [vmem:[%s11 + $0x20] sm:$0xf]
    %v1099 = vld [vmem:[%s11 + $0x24] sm:$0xf]
    %v1100 = vld [vmem:[%s11 + $0x28] sm:$0xf]
    %v1101 = vld [vmem:[%s11 + $0x2c] sm:$0xf]
    %v1102 = vld [vmem:[%s11 + $0x30] sm:$0xf]
    %v1103 = vld [vmem:[%s11 + $0x34] sm:$0xf]
    %v1104 = vld [vmem:[%s11 + $0x38] sm:$0xf]
    %v1105 = vld [vmem:[%s11 + $0x3c] sm:$0xf]
    %v1106 = vld [vmem:[%s11 + $0x40] sm:$0xf]
    %v1107 = vld [vmem:[%s11 + $0x44] sm:$0xf]
    %v1108 = vld [vmem:[%s11 + $0x48] sm:$0xf]
    %v1109 = vld [vmem:[%s11 + $0x4c] sm:$0xf]
    %v1110 = vld [vmem:[%s11 + $0x50] sm:$0xf]
    %v1111 = vld [vmem:[%s11 + $0x54] sm:$0xf]
    %v1112 = vld [vmem:[%s11 + $0x58] sm:$0xf]
    %v1113 = vld [vmem:[%s11 + $0x5c] sm:$0xf]
    %v1114 = vld [vmem:[%s11 + $0x60] sm:$0xf]
    %v1115 = vld [vmem:[%s11 + $0x64] sm:$0xf]
    %v1116 = vld [vmem:[%s11 + $0x68] sm:$0xf]
    %v1117 = vld [vmem:[%s11 + $0x6c] sm:$0xf]
    %v1118 = vld [vmem:[%s11 + $0x70] sm:$0xf]
    %v1119 = vld [vmem:[%s11 + $0x74] sm:$0xf]
    %v1120 = vld [vmem:[%s11 + $0x78] sm:$0xf]
    %v1121 = vld [vmem:[%s11 + $0x7c] sm:$0xf]
    %v1122 = vld [vmem:[%s11 + $0x80] sm:$0xf]
    %v1123 = vld [vmem:[%s11 + $0x84] sm:$0xf]
    %v1124 = vld [vmem:[%s11 + $0x88] sm:$0xf]
    %v1125 = vld [vmem:[%s11 + $0x8c] sm:$0xf]
    %v1126 = vld [vmem:[%s11 + $0x90] sm:$0xf]
    %v1127 = vld [vmem:[%s11 + $0x94] sm:$0xf]
    %v1128 = vld [vmem:[%s11 + $0x98] sm:$0xf]
    %v1129 = vld [vmem:[%s11 + $0x9c] sm:$0xf]
    %v1130 = vld [vmem:[%s11 + $0xa0] sm:$0xf]
    %v1131 = vld [vmem:[%s11 + $0xa4] sm:$0xf]
    %v1132 = vld [vmem:[%s11 + $0xa8] sm:$0xf]
    %v1133 = vld [vmem:[%s11 + $0xac] sm:$0xf]
    %v1134 = vld [vmem:[%s11 + $0xb0] sm:$0xf]
    %v1135 = vld [vmem:[%s11 + $0xb4] sm:$0xf]
    %v1136 = vld [vmem:[%s11 + $0xb8] sm:$0xf]
    %v1137 = vld [vmem:[%s11 + $0xbc] sm:$0xf]
    %v1138 = vld [vmem:[%s11 + $0xc0] sm:$0xf]
    %v1139 = vld [vmem:[%s11 + $0xc4] sm:$0xf]
    %v1140 = vld [vmem:[%s11 + $0xc8] sm:$0xf]
    %v1141 = vld [vmem:[%s11 + $0xcc] sm:$0xf]
    %v1142 = vld [vmem:[%s11 + $0xd0] sm:$0xf]
    %v1143 = vld [vmem:[%s11 + $0xd4] sm:$0xf]
    %v1144 = vld [vmem:[%s11 + $0xd8] sm:$0xf]
    %v1145 = vld [vmem:[%s11 + $0xdc] sm:$0xf]
    %v1146 = vld [vmem:[%s11 + $0xe0] sm:$0xf]
    %v1147 = vld [vmem:[%s11 + $0xe4] sm:$0xf]
    %v1148 = vld [vmem:[%s11 + $0xe8] sm:$0xf]
    %v1149 = vld [vmem:[%s11 + $0xec] sm:$0xf]
    %v1150 = vld [vmem:[%s11 + $0xf0] sm:$0xf]
    %v1151 = vld [vmem:[%s11 + $0xf4] sm:$0xf]
    %v1152 = vld [vmem:[%s11 + $0xf8] sm:$0xf]
    %v1153 = vld [vmem:[%s11 + $0xfc] sm:$0xf]
    %v1154 = vld [vmem:[%s12] sm:$0x1]
    %v1156 = vperm.slane %v1154, 0
    %v1222 = vunpack.c.l.b16 %v1090
    %v1223 = vunpack.c.l.b16 %v1091
    %v1224 = vunpack.c.l.b16 %v1092
    %v1225 = vunpack.c.l.b16 %v1093
    %v1226 = vunpack.c.l.b16 %v1094
    %v1227 = vunpack.c.l.b16 %v1095
    %v1228 = vunpack.c.l.b16 %v1096
    %v1229 = vunpack.c.l.b16 %v1097
    %v1230 = vunpack.c.l.b16 %v1098
    %v1231 = vunpack.c.l.b16 %v1099
    %v1232 = vunpack.c.l.b16 %v1100
    %v1233 = vunpack.c.l.b16 %v1101
    %v1234 = vunpack.c.l.b16 %v1102
    %v1235 = vunpack.c.l.b16 %v1103
    %v1236 = vunpack.c.l.b16 %v1104
    %v1237 = vunpack.c.l.b16 %v1105
    %v1238 = vunpack.c.l.b16 %v1106
    %v1239 = vunpack.c.l.b16 %v1107
    %v1240 = vunpack.c.l.b16 %v1108
    %v1241 = vunpack.c.l.b16 %v1109
    %v1242 = vunpack.c.l.b16 %v1110
    %v1243 = vunpack.c.l.b16 %v1111
    %v1244 = vunpack.c.l.b16 %v1112
    %v1245 = vunpack.c.l.b16 %v1113
    %v1246 = vunpack.c.l.b16 %v1114
    %v1247 = vunpack.c.l.b16 %v1115
    %v1248 = vunpack.c.l.b16 %v1116
    %v1249 = vunpack.c.l.b16 %v1117
    %v1250 = vunpack.c.l.b16 %v1118
    %v1251 = vunpack.c.l.b16 %v1119
    %v1252 = vunpack.c.l.b16 %v1120
    %v1253 = vunpack.c.l.b16 %v1121
    %v1254 = vunpack.c.l.b16 %v1122
    %v1255 = vunpack.c.l.b16 %v1123
    %v1256 = vunpack.c.l.b16 %v1124
    %v1257 = vunpack.c.l.b16 %v1125
    %v1258 = vunpack.c.l.b16 %v1126
    %v1259 = vunpack.c.l.b16 %v1127
    %v1260 = vunpack.c.l.b16 %v1128
    %v1261 = vunpack.c.l.b16 %v1129
    %v1262 = vunpack.c.l.b16 %v1130
    %v1263 = vunpack.c.l.b16 %v1131
    %v1264 = vunpack.c.l.b16 %v1132
    %v1265 = vunpack.c.l.b16 %v1133
    %v1266 = vunpack.c.l.b16 %v1134
    %v1267 = vunpack.c.l.b16 %v1135
    %v1268 = vunpack.c.l.b16 %v1136
    %v1269 = vunpack.c.l.b16 %v1137
    %v1270 = vunpack.c.l.b16 %v1138
    %v1271 = vunpack.c.l.b16 %v1139
    %v1272 = vunpack.c.l.b16 %v1140
    %v1273 = vunpack.c.l.b16 %v1141
    %v1274 = vunpack.c.l.b16 %v1142
    %v1275 = vunpack.c.l.b16 %v1143
    %v1276 = vunpack.c.l.b16 %v1144
    %v1277 = vunpack.c.l.b16 %v1145
    %v1278 = vunpack.c.l.b16 %v1146
    %v1279 = vunpack.c.l.b16 %v1147
    %v1280 = vunpack.c.l.b16 %v1148
    %v1281 = vunpack.c.l.b16 %v1149
    %v1282 = vunpack.c.l.b16 %v1150
    %v1283 = vunpack.c.l.b16 %v1151
    %v1284 = vunpack.c.l.b16 %v1152
    %v1285 = vunpack.c.l.b16 %v1153
    %v1286 = vpack.c.b16 %v1223, %v1222
    %v1287 = vpack.c.b16 %v1225, %v1224
    %v1288 = vpack.c.b16 %v1227, %v1226
    %v1289 = vpack.c.b16 %v1229, %v1228
    %v1290 = vpack.c.b16 %v1231, %v1230
    %v1291 = vpack.c.b16 %v1233, %v1232
    %v1292 = vpack.c.b16 %v1235, %v1234
    %v1293 = vpack.c.b16 %v1237, %v1236
    %v1294 = vpack.c.b16 %v1239, %v1238
    %v1295 = vpack.c.b16 %v1241, %v1240
    %v1296 = vpack.c.b16 %v1243, %v1242
    %v1297 = vpack.c.b16 %v1245, %v1244
    %v1298 = vpack.c.b16 %v1247, %v1246
    %v1299 = vpack.c.b16 %v1249, %v1248
    %v1300 = vpack.c.b16 %v1251, %v1250
    %v1301 = vpack.c.b16 %v1253, %v1252
    %v1302 = vpack.c.b16 %v1255, %v1254
    %v1303 = vpack.c.b16 %v1257, %v1256
    %v1304 = vpack.c.b16 %v1259, %v1258
    %v1305 = vpack.c.b16 %v1261, %v1260
    %v1306 = vpack.c.b16 %v1263, %v1262
    %v1307 = vpack.c.b16 %v1265, %v1264
    %v1308 = vpack.c.b16 %v1267, %v1266
    %v1309 = vpack.c.b16 %v1269, %v1268
    %v1310 = vpack.c.b16 %v1271, %v1270
    %v1311 = vpack.c.b16 %v1273, %v1272
    %v1312 = vpack.c.b16 %v1275, %v1274
    %v1313 = vpack.c.b16 %v1277, %v1276
    %v1314 = vpack.c.b16 %v1279, %v1278
    %v1315 = vpack.c.b16 %v1281, %v1280
    %v1316 = vpack.c.b16 %v1283, %v1282
    %v1317 = vpack.c.b16 %v1285, %v1284
    %1350 = vmatpush.bf16.msra.mxu0 %v1293
    %1351 = vmatpush.bf16.msra.mxu0 %v1292
    %1352 = vmatpush.bf16.msra.mxu0 %v1291
    %1353 = vmatpush.bf16.msra.mxu0 %v1290
    %1354 = vmatpush.bf16.msra.mxu0 %v1289
    %1355 = vmatpush.bf16.msra.mxu0 %v1288
    %1356 = vmatpush.bf16.msra.mxu0 %v1287
    %1357 = vmatpush.bf16.msra.mxu0 %v1286
    %1358 = vmatmul.bf16.gmra.mxu0 %v1086
    %v1359 = vpop.f32.mrf.mxu0
    %v1360 = vadd.f32 %v1156, %v1359
    %v1361 = vpop.f32.mrf.mxu0
    %1362 = vdwg.mxu0
    %1363 = vmatpush.bf16.msra.mxu0 %v1301
    %1364 = vmatpush.bf16.msra.mxu0 %v1300
    %1365 = vmatpush.bf16.msra.mxu0 %v1299
    %1366 = vmatpush.bf16.msra.mxu0 %v1298
    %1367 = vmatpush.bf16.msra.mxu0 %v1297
    %1368 = vmatpush.bf16.msra.mxu0 %v1296
    %1369 = vmatpush.bf16.msra.mxu0 %v1295
    %1370 = vmatpush.bf16.msra.mxu0 %v1294
    %1371 = vmatmul.bf16.gmra.mxu0 %v1087
    %v1372 = vpop.f32.mrf.mxu0
    %v1373 = vadd.f32 %v1360, %v1372
    %v1374 = vpop.f32.mrf.mxu0
    %1375 = vdwg.mxu0
    %1376 = vmatpush.bf16.msra.mxu0 %v1309
    %1377 = vmatpush.bf16.msra.mxu0 %v1308
    %1378 = vmatpush.bf16.msra.mxu0 %v1307
    %1379 = vmatpush.bf16.msra.mxu0 %v1306
    %1380 = vmatpush.bf16.msra.mxu0 %v1305
    %1381 = vmatpush.bf16.msra.mxu0 %v1304
    %1382 = vmatpush.bf16.msra.mxu0 %v1303
    %1383 = vmatpush.bf16.msra.mxu0 %v1302
    %1384 = vmatmul.bf16.gmra.mxu0 %v1088
    %v1385 = vpop.f32.mrf.mxu0
    %v1386 = vadd.f32 %v1373, %v1385
    %v1387 = vpop.f32.mrf.mxu0
    %1388 = vdwg.mxu0
    %1389 = vmatpush.bf16.msra.mxu0 %v1317
    %1390 = vmatpush.bf16.msra.mxu0 %v1316
    %1391 = vmatpush.bf16.msra.mxu0 %v1315
    %1392 = vmatpush.bf16.msra.mxu0 %v1314
    %1393 = vmatpush.bf16.msra.mxu0 %v1313
    %1394 = vmatpush.bf16.msra.mxu0 %v1312
    %1395 = vmatpush.bf16.msra.mxu0 %v1311
    %1396 = vmatpush.bf16.msra.mxu0 %v1310
    %1397 = vmatmul.bf16.gmra.mxu0 %v1089
    %v1398 = vpop.f32.mrf.mxu0
    %v1399 = vadd.f32 %v1386, %v1398
    %v1400 = vpop.f32.mrf.mxu0
    %1401 = vdwg.mxu0
    %1402 = vst.msk [vmem:[#allocation8] sm:$0xff] %vm133, %v1399
    // Predicated region
    $region66: #{tpu_custom_call.1} parent=1 // pred_check
      _
    $region67: #{tpu_custom_call.1} parent=1 // pred_check_branch
      %1404 = sbr.rel (0) target = $region69
    $region68: #{tpu_custom_call.1} parent=1 // pred_region
      %1406 = vsyncadd [#allocation4], 0
      %s1408 = sshll.u32 [#allocation8], 4
      %s1409 = int_to_ptr.vmem [resolvable:$true] %s1408
      %s1410 = sshll.u32 %s13, 4
      %s1411 = int_to_ptr.hbm [resolvable:$true] %s1410
      %1413 = dma.vmem_to_hbm [thread:$0]  %s1409, 128, %s1411, [#allocation4]
    $region69: #{tpu_custom_call.1} parent=1 // pred_fallthru
      _
    // Predicated region
    $region70: #{tpu_custom_call.1} parent=1 // pred_check
      _
    $region71: #{tpu_custom_call.1} parent=1 // pred_check_branch
      %1415 = sbr.rel (0) target = $region73
    $region72: #{tpu_custom_call.1} parent=1 // pred_region
      %1417 = dma.done [#allocation4], 128
    $region73: #{tpu_custom_call.1} parent=1 // pred_fallthru
      _
    %1418 = vsyncpa [#allocation3], 1
    %1419 = vsyncpa [#allocation6], 1
    %1420 = vsyncpa [#allocation4], 1

</llo_original>
